<compile_context>
chip_gen: v7x
topology: tpu7x:2x2x1
jax: 0.10.0
libtpu: 0.0.40
codegen_flags: <defaults>
</compile_context>

<pallas_src>
import functools

import jax
import jax.numpy as jnp
from jax.experimental import pallas as pl
from jax.experimental.pallas import tpu as pltpu

_LANE = 128
_MAX_BLOCK_ROWS = 2048            # (2048, 128) f32 block = 1 MiB per pipeline buffer
_VMEM_LIMIT_BYTES = 32 * 1024 * 1024


def _sublane_align(dtype):
    # (8,128) tiling for 32-bit, (16,128) for 16-bit, (32,128) for 8-bit dtypes.
    itemsize = jnp.dtype(dtype).itemsize
    return max(8, 32 // max(1, itemsize))


def _num_tensorcores():
    try:
        kind = jax.devices()[0].device_kind.lower()
    except Exception:
        return 1
    # 2 TensorCores per device on v4 / v5p (megacore) and v7x; 1 on v5e / v6e.
    return 2 if any(tag in kind for tag in ("v4", "v5p", "v7")) else 1


def _plan_tiles(rows_full, align, num_cores):
    """Pick (rows_kernel, block_rows, steps_per_core, cores) with exact tiling."""
    if rows_full < align:
        return 0, align, 0, 1
    if rows_full // num_cores < align:
        num_cores = 1
    per_core = rows_full // num_cores
    block_rows = max(align, min(_MAX_BLOCK_ROWS, (per_core // align) * align))
    steps = per_core // block_rows
    rows_kernel = num_cores * steps * block_rows
    return rows_kernel, block_rows, steps, num_cores


def _neg_bce_partial_sum_kernel(x_ref, t_ref, o_ref, *, block_rows):
    """Accumulate sum of  t*log(x) + (1-t)*log(1-x)  (== -BCE) per lane slot."""
    @pl.when(pl.program_id(1) == 0)
    def _():
        o_ref[...] = jnp.zeros_like(o_ref)

    x = x_ref[...].astype(jnp.float32)
    t = t_ref[...].astype(jnp.float32)

    # PyTorch binary_cross_entropy clamps the log terms at -100.
    # (On v7x the loop is EUP-bound; bf16 logs would double transcendental
    #  throughput if the tolerance allowed — kept f32 to match PyTorch.)
    log_x = jnp.maximum(jnp.log(x), -100.0)
    log_1mx = jnp.maximum(jnp.log(1.0 - x), -100.0)
    # One multiply per element:  log(1-x) + t*(log x - log(1-x))  ==  -BCE.
    neg_bce = log_1mx + t * (log_x - log_1mx)

    # VPU-only partial reduction into the resident (1, 8, 128) accumulator.
    partial = neg_bce.reshape(block_rows // 8, 8, _LANE).sum(axis=0)
    o_ref[...] += partial.reshape(1, 8, _LANE)


def focal_loss_2d(probs, target, *, alpha=0.25, gamma=0.0, size_average=True,
                  weight=None):
    """Pallas implementation of FocalLoss2d.forward. Returns a scalar (f32)."""
    assert probs.shape == target.shape
    del weight  # Never applied by the reference forward (BCE called without it).

    n = int(probs.size)
    x_flat = probs.reshape(-1)
    t_flat = target.reshape(-1)

    rows_full, rem = divmod(n, _LANE)
    align = max(_sublane_align(probs.dtype), _sublane_align(target.dtype))
    rows_kernel, block_rows, steps, cores = _plan_tiles(
        rows_full, align, _num_tensorcores())

    neg_bce_sum = jnp.float32(0.0)

    if rows_kernel > 0:
        if rem == 0:
            # Free reshape; the grid's index_map simply never touches rows
            # beyond rows_kernel (those go to the XLA tail below).
            rows_view = rows_full
            x2 = x_flat.reshape(rows_view, _LANE)
            t2 = t_flat.reshape(rows_view, _LANE)
        else:
            # Non-multiple-of-128 sizes: one prefix slice of the kernel region
            # (edge case; still avoids the old full end-to-end pad of BOTH inputs).
            rows_view = rows_kernel
            k = rows_kernel * _LANE
            x2 = x_flat[:k].reshape(rows_view, _LANE)
            t2 = t_flat[:k].reshape(rows_view, _LANE)

        kernel = functools.partial(_neg_bce_partial_sum_kernel,
                                   block_rows=block_rows)
        in_map = lambda c, i: (c * steps + i, 0)  # noqa: E731

        partials = pl.pallas_call(
            kernel,
            out_shape=jax.ShapeDtypeStruct((cores, 8, _LANE), jnp.float32),
            grid_spec=pltpu.PrefetchScalarGridSpec(
                num_scalar_prefetch=0,
                grid=(cores, steps),
                in_specs=[
                    pl.BlockSpec((block_rows, _LANE), in_map),
                    pl.BlockSpec((block_rows, _LANE), in_map),
                ],
                out_specs=pl.BlockSpec((1, 8, _LANE), lambda c, i: (c, 0, 0)),
            ),
            compiler_params=pltpu.CompilerParams(
                dimension_semantics=("parallel", "arbitrary"),
                vmem_limit_bytes=_VMEM_LIMIT_BYTES,
            ),
        )(x2, t2)
        neg_bce_sum = neg_bce_sum + jnp.sum(partials)

    # Tail (< one block slab worth of elements): handful of fused XLA ops.
    start = rows_kernel * _LANE
    if start < n:
        xt = x_flat[start:].astype(jnp.float32)
        tt = t_flat[start:].astype(jnp.float32)
        log_x = jnp.maximum(jnp.log(xt), -100.0)
        log_1mx = jnp.maximum(jnp.log(1.0 - xt), -100.0)
        neg_bce_sum = neg_bce_sum + jnp.sum(log_1mx + tt * (log_x - log_1mx))

    # Single negation folded here: logpt = -mean(BCE) = sum(-BCE)/n.
    logpt = neg_bce_sum / jnp.float32(n)
    pt = jnp.exp(logpt)
    loss = -1.0 * jnp.float32(alpha) * (1.0 - pt) ** jnp.float32(gamma) * logpt
    # size_average: mean vs sum of a 0-d loss is identical — returned as-is.
    return loss


def _focal_loss_ref(probs, target, *, alpha=0.25, gamma=0.0):
    x = probs.reshape(-1).astype(jnp.float32)
    t = target.reshape(-1).astype(jnp.float32)
    log_x = jnp.maximum(jnp.log(x), -100.0)
    log_1mx = jnp.maximum(jnp.log(1.0 - x), -100.0)
    bce = jnp.mean(-(t * log_x + (1.0 - t) * log_1mx))
    logpt = -bce
    pt = jnp.exp(logpt)
    return -1.0 * alpha * (1.0 - pt) ** gamma * logpt


if __name__ == "__main__":
    key = jax.random.PRNGKey(0)
    k_x, k_t, k_x2, k_t2 = jax.random.split(key, 4)

    # NCHW, matching the PyTorch convention.
    N, C, H, W = 2, 4, 16, 16
    probs = jax.random.uniform(k_x, (N, C, H, W), jnp.float32, 1e-4, 1.0 - 1e-4)
    target = jax.random.bernoulli(k_t, 0.5, (N, C, H, W)).astype(jnp.float32)

    # self.weight placeholder (shape (C,)); unused by the reference forward math.
    weight = jnp.ones((C,), jnp.float32)

    loss = focal_loss_2d(probs, target, alpha=0.25, gamma=0.0,
                         size_average=True, weight=weight)
    loss = jax.block_until_ready(loss)
    ref = _focal_loss_ref(probs, target, alpha=0.25, gamma=0.0)
    assert jnp.allclose(loss, ref, rtol=1e-4, atol=1e-6), (loss, ref)

    # Non-trivial gamma / alpha.
    loss2 = focal_loss_2d(probs, target, alpha=0.5, gamma=2.0, size_average=False)
    loss2 = jax.block_until_ready(loss2)
    ref2 = _focal_loss_ref(probs, target, alpha=0.5, gamma=2.0)
    assert jnp.allclose(loss2, ref2, rtol=1e-4, atol=1e-6), (loss2, ref2)

    # Ragged size (not a multiple of 128): exercises kernel prefix + XLA tail.
    probs3 = jax.random.uniform(k_x2, (1, 1, 40, 100), jnp.float32, 1e-4, 1.0 - 1e-4)
    target3 = jax.random.bernoulli(k_t2, 0.5, (1, 1, 40, 100)).astype(jnp.float32)
    loss3 = jax.block_until_ready(
        focal_loss_2d(probs3, target3, alpha=0.25, gamma=2.0))
    ref3 = _focal_loss_ref(probs3, target3, alpha=0.25, gamma=2.0)
    assert jnp.allclose(loss3, ref3, rtol=1e-4, atol=1e-6), (loss3, ref3)

    print("KERNEL_OK")
</pallas_src>

<mosaic_0001>
module attributes {stable_mosaic.version = 11 : i64} {
  func.func @_neg_bce_partial_sum_kernel(%arg0: i32, %arg1: i32, %arg2: memref<16x128xf32, #tpu.memory_space<vmem>>, %arg3: memref<16x128xf32, #tpu.memory_space<vmem>>, %arg4: memref<1x8x128xf32, #tpu.memory_space<vmem>>) attributes {dimension_semantics = [#tpu.dimension_semantics<parallel>, #tpu.dimension_semantics<arbitrary>], iteration_bounds = array<i64: 1, 1>, scalar_prefetch = 0 : i64, scratch_operands = 0 : i64, tpu.core_type = #tpu.core_type<tc>, window_params = [{transform_indices = @transform_0, window_bounds = array<i64: 16, 128>}, {transform_indices = @transform_1, window_bounds = array<i64: 16, 128>}, {transform_indices = @transform_2, window_bounds = array<i64: 1, 8, 128>}]} {
    %c0_i32 = arith.constant 0 : i32
    %0 = arith.cmpi eq, %arg1, %c0_i32 : i32
    %1 = arith.extui %0 : i1 to i32
    %c0_i32_0 = arith.constant 0 : i32
    %2 = arith.cmpi ne, %1, %c0_i32_0 : i32
    scf.if %2 {
      %cst_13 = arith.constant 0.000000e+00 : f32
      %22 = vector.broadcast %cst_13 : f32 to vector<1x8x128xf32>
      %c0_14 = arith.constant 0 : index
      %c0_15 = arith.constant 0 : index
      %c0_16 = arith.constant 0 : index
      %23 = vector.load %arg4[%c0_14, %c0_15, %c0_16] : memref<1x8x128xf32, #tpu.memory_space<vmem>>, vector<1x8x128xf32>
      tpu.vector_store %arg4[%c0_14, %c0_15, %c0_16], %22 {strides = array<i32>} : memref<1x8x128xf32, #tpu.memory_space<vmem>>, vector<1x8x128xf32>,
    } else {
    }
    %c0 = arith.constant 0 : index
    %c0_1 = arith.constant 0 : index
    %3 = vector.load %arg2[%c0, %c0_1] : memref<16x128xf32, #tpu.memory_space<vmem>>, vector<16x128xf32>
    %c0_2 = arith.constant 0 : index
    %c0_3 = arith.constant 0 : index
    %4 = vector.load %arg3[%c0_2, %c0_3] : memref<16x128xf32, #tpu.memory_space<vmem>>, vector<16x128xf32>
    %5 = math.log %3 : vector<16x128xf32>
    %cst = arith.constant -1.000000e+02 : f32
    %6 = vector.broadcast %cst : f32 to vector<16x128xf32>
    %7 = arith.maximumf %5, %6 : vector<16x128xf32>
    %cst_4 = arith.constant 1.000000e+00 : f32
    %8 = vector.broadcast %cst_4 : f32 to vector<16x128xf32>
    %9 = arith.subf %8, %3 : vector<16x128xf32>
    %10 = math.log %9 : vector<16x128xf32>
    %cst_5 = arith.constant -1.000000e+02 : f32
    %11 = vector.broadcast %cst_5 : f32 to vector<16x128xf32>
    %12 = arith.maximumf %10, %11 : vector<16x128xf32>
    %13 = arith.subf %7, %12 : vector<16x128xf32>
    %14 = arith.mulf %4, %13 : vector<16x128xf32>
    %15 = arith.addf %12, %14 : vector<16x128xf32>
    %16 = vector.shape_cast %15 : vector<16x128xf32> to vector<2x8x128xf32>
    %cst_6 = arith.constant dense<0.000000e+00> : vector<8x128xf32>
    %17 = vector.multi_reduction <add>, %16, %cst_6 [0] : vector<2x8x128xf32> to vector<8x128xf32>
    %c0_7 = arith.constant 0 : index
    %c0_8 = arith.constant 0 : index
    %c0_9 = arith.constant 0 : index
    %18 = vector.load %arg4[%c0_7, %c0_8, %c0_9] : memref<1x8x128xf32, #tpu.memory_space<vmem>>, vector<1x8x128xf32>
    %19 = vector.shape_cast %17 : vector<8x128xf32> to vector<1x8x128xf32>
    %20 = arith.addf %18, %19 : vector<1x8x128xf32>
    %c0_10 = arith.constant 0 : index
    %c0_11 = arith.constant 0 : index
    %c0_12 = arith.constant 0 : index
    %21 = vector.load %arg4[%c0_10, %c0_11, %c0_12] : memref<1x8x128xf32, #tpu.memory_space<vmem>>, vector<1x8x128xf32>
    tpu.vector_store %arg4[%c0_10, %c0_11, %c0_12], %20 {strides = array<i32>} : memref<1x8x128xf32, #tpu.memory_space<vmem>>, vector<1x8x128xf32>,
    return
  }
  func.func @transform_0(%arg0: i32, %arg1: i32) -> (i32, i32) {
    %c1_i32 = arith.constant 1 : i32
    %0 = arith.muli %arg0, %c1_i32 : i32
    %1 = arith.addi %0, %arg1 : i32
    %c0_i32 = arith.constant 0 : i32
    %c0_i32_0 = arith.constant 0 : i32
    return %1, %c0_i32 : i32, i32
  }
  func.func @transform_1(%arg0: i32, %arg1: i32) -> (i32, i32) {
    %c1_i32 = arith.constant 1 : i32
    %0 = arith.muli %arg0, %c1_i32 : i32
    %1 = arith.addi %0, %arg1 : i32
    %c0_i32 = arith.constant 0 : i32
    %c0_i32_0 = arith.constant 0 : i32
    return %1, %c0_i32 : i32, i32
  }
  func.func @transform_2(%arg0: i32, %arg1: i32) -> (i32, i32, i32) {
    %c0_i32 = arith.constant 0 : i32
    %c0_i32_0 = arith.constant 0 : i32
    %c0_i32_1 = arith.constant 0 : i32
    return %arg0, %c0_i32, %c0_i32_0 : i32, i32, i32
  }
}

</mosaic_0001>

<llo_original>
// kernel: tpu_custom_call.1
$region0: #{tpu_custom_call.1}
  #allocation0 [shape = 'u32[]', space=smem, size = 0x4, offset = 0x4, fixed_abs, tag = 'smem constant byte address 0x4 - core index']
  #allocation1 [shape = 'u32[144,128]{1,0:T(1,128)}', space=vmem, size = 0x12000, scoped, tag = 'internal scratch']
  %s0 = inlined_call_operand.hbm [shape: f32[16,128], index: 0, kind: input, shape index: {}]
  %s1 = inlined_call_operand.hbm [shape: f32[16,128], index: 1, kind: input, shape index: {}]
  %s2 = inlined_call_operand.hbm [shape: f32[1,8,128], index: 2, kind: output, shape index: {}]
  %s3 = sld [smem:[#allocation0]]
  $region30: #{tpu_custom_call.1} parent=0
    _
  %s5 = ssub.s32 1, %s3
  %s6 = scalar_select 0, %s5, %s3
  $region1: #{tpu_custom_call.1} parent=0
    #allocation2 [shape = 'u8[8192]{0}', space=vmem, size = 0x2000, scoped, tag = 'input window, operand 0, single buffered']
    #allocation3 [shape = 's32[1]{0}', space=sflag, size = 0x4, scoped, tag = 'scoped memory for tpu_custom_call.1']
    #allocation4 [shape = 's32[1]{0}', space=sflag, size = 0x4, scoped, tag = 'scoped memory for tpu_custom_call.1']
    #allocation5 [shape = 'u8[8192]{0}', space=vmem, size = 0x2000, scoped, tag = 'input window, operand 1, single buffered']
    #allocation6 [shape = 's32[1]{0}', space=sflag, size = 0x4, scoped, tag = 'scoped memory for tpu_custom_call.1']
    #allocation7 [shape = 'u8[4096]{0}', space=vmem, size = 0x1000, scoped, tag = 'output window, operand 0, single buffered']
    %7 = vsyncpa [#allocation3], 0
    %8 = vsyncpa [#allocation6], 0
    %9 = vsyncpa [#allocation4], 0
    // Predicated region
    $region2: #{tpu_custom_call.1} parent=1 // pred_check
      _
    $region3: #{tpu_custom_call.1} parent=1 // pred_check_branch
      %11 = sbr.rel (0) target = $region5
    $region4: #{tpu_custom_call.1} parent=1 // pred_region
      %s12 = sadd.s32 0, 0
      %s13 = smul.u32 2, %s12
      %s15 = ssub.s32 256, 256
      %16 = vsyncadd [#allocation3], %s15
      %s17 = smul.addr %s13, 128
      %s18 = scalar_lea.hbm %s0, %s17
      %s19 = sshll.u32 [#allocation2], 4
      %s20 = int_to_ptr.vmem [resolvable:$true] %s19
      %25 = dma.hbm_to_vmem [thread:$0]  %s18, 256, %s20, [#allocation3], 128, 128, 8
    $region5: #{tpu_custom_call.1} parent=1 // pred_fallthru
      _
    // Predicated region
    $region6: #{tpu_custom_call.1} parent=1 // pred_check
      _
    $region7: #{tpu_custom_call.1} parent=1 // pred_check_branch
      %27 = sbr.rel (0) target = $region9
    $region8: #{tpu_custom_call.1} parent=1 // pred_region
      %s28 = sadd.s32 0, 0
      %s29 = smul.u32 2, %s28
      %s31 = ssub.s32 256, 256
      %32 = vsyncadd [#allocation6], %s31
      %s33 = smul.addr %s29, 128
      %s34 = scalar_lea.hbm %s1, %s33
      %s35 = sshll.u32 [#allocation5], 4
      %s36 = int_to_ptr.vmem [resolvable:$true] %s35
      %41 = dma.hbm_to_vmem [thread:$0]  %s34, 256, %s36, [#allocation6], 128, 128, 8
    $region9: #{tpu_custom_call.1} parent=1 // pred_fallthru
      _
    // Predicated region
    $region10: #{tpu_custom_call.1} parent=1 // pred_check
      _
    $region11: #{tpu_custom_call.1} parent=1 // pred_check_branch
      %43 = sbr.rel (0) target = $region13
    $region12: #{tpu_custom_call.1} parent=1 // pred_region
      %44 = dma.done [#allocation3], 256
    $region13: #{tpu_custom_call.1} parent=1 // pred_fallthru
      _
    // Predicated region
    $region14: #{tpu_custom_call.1} parent=1 // pred_check
      _
    $region15: #{tpu_custom_call.1} parent=1 // pred_check_branch
      %46 = sbr.rel (0) target = $region17
    $region16: #{tpu_custom_call.1} parent=1 // pred_region
      %47 = dma.done [#allocation6], 256
    $region17: #{tpu_custom_call.1} parent=1 // pred_fallthru
      _
    %s48 = sadd.s32 0, 0
    %s49 = smul.u32 2, %s48
    %s50 = sadd.s32 0, 0
    %s51 = smul.u32 2, %s50
    %p52 = scmp.eq.s32.totalorder 0, 0
    // Predicated region
    $region18: #{tpu_custom_call.1} parent=1 // pred_check
      %p53 = pneg %p52
    $region19: #{tpu_custom_call.1} parent=1 // pred_check_branch
      %55 = sbr.rel (%p53) target = $region21
    $region20: #{tpu_custom_call.1} parent=1 // pred_region
      %56 = vst [vmem:[#allocation7] sm:$0xff] 0.0
    $region21: #{tpu_custom_call.1} parent=1 // pred_fallthru
      _
    %v57 = vld [vmem:[#allocation2] sm:$0xff]
    %v58 = vld [vmem:[#allocation2 + $0x8] sm:$0xff]
    %v59 = vld [vmem:[#allocation5] sm:$0xff]
    %v60 = vld [vmem:[#allocation5 + $0x8] sm:$0xff]
    %v61 = vlog2.pop %v57
    %v62 = vmul.f32 %v61, 0.6931472
    %v63 = vlog2.pop %v58
    %v64 = vmul.f32 %v63, 0.6931472
    %v65 = vmax.f32 %v62, -100.0
    %v66 = vmax.f32 %v64, -100.0
    %v67 = vsub.f32 1.0, %v57
    %v68 = vsub.f32 1.0, %v58
    %v69 = vlog2.pop %v67
    %v70 = vmul.f32 %v69, 0.6931472
    %v71 = vlog2.pop %v68
    %v72 = vmul.f32 %v71, 0.6931472
    %v73 = vmax.f32 %v70, -100.0
    %v74 = vmax.f32 %v72, -100.0
    %v75 = vsub.f32 %v65, %v73
    %v76 = vsub.f32 %v66, %v74
    %v77 = vmul.f32 %v59, %v75
    %v78 = vmul.f32 %v60, %v76
    %v79 = vadd.f32 %v73, %v77
    %v80 = vadd.f32 %v74, %v78
    %v81 = vadd.f32 %v79, %v80
    %v82 = vld [vmem:[#allocation7] sm:$0xff]
    %v83 = vadd.f32 %v82, %v81
    %84 = vst [vmem:[#allocation7] sm:$0xff] %v83
    // Predicated region
    $region22: #{tpu_custom_call.1} parent=1 // pred_check
      _
    $region23: #{tpu_custom_call.1} parent=1 // pred_check_branch
      %86 = sbr.rel (0) target = $region25
    $region24: #{tpu_custom_call.1} parent=1 // pred_region
      %s88 = ssub.s32 128, 128
      %89 = vsyncadd [#allocation4], %s88
      %s91 = sshll.u32 [#allocation7], 4
      %s92 = int_to_ptr.vmem [resolvable:$true] %s91
      %94 = dma.vmem_to_hbm [thread:$0]  %s92, 128, %s2, [#allocation4]
    $region25: #{tpu_custom_call.1} parent=1 // pred_fallthru
      _
    // Predicated region
    $region26: #{tpu_custom_call.1} parent=1 // pred_check
      _
    $region27: #{tpu_custom_call.1} parent=1 // pred_check_branch
      %96 = sbr.rel (0) target = $region29
    $region28: #{tpu_custom_call.1} parent=1 // pred_region
      %97 = dma.done [#allocation4], 128
    $region29: #{tpu_custom_call.1} parent=1 // pred_fallthru
      _
    %98 = vsyncpa [#allocation3], 1
    %99 = vsyncpa [#allocation6], 1
    %100 = vsyncpa [#allocation4], 1

</llo_original>
